<compile_context>
chip_gen: v7x
topology: tpu7x:2x2x1
jax: 0.10.0
libtpu: 0.0.40
codegen_flags: <defaults>
</compile_context>

<pallas_src>
import functools

import jax
import jax.numpy as jnp
from jax.experimental import pallas as pl
from jax.experimental.pallas import tpu as pltpu


def _round_up(n, m):
    return -(-n // m) * m


def _sphere_proj_kernel(x_ref, o_ref):
    """Single-pass solve: each block holds full feature rows."""
    x = x_ref[...]
    xf = x.astype(jnp.float32)
    ss = jnp.sum(xf * xf, axis=-1, keepdims=True)       # XLU reduce, f32 accum
    inv = jax.lax.rsqrt(jnp.maximum(ss, 1e-12))          # EUP rsqrt, eps-guarded
    # Keep the elementwise multiply in the input dtype (bf16 stays bf16 on
    # v6e/v7x); the reduction above already happened in f32.
    # NOTE: when the last batch block is partial, the out-of-range rows hold
    # undefined data and produce garbage here -- harmless, Pallas never writes
    # those rows back to HBM.  Do not "fix" this by reading them.
    o_ref[...] = (x * inv.astype(x.dtype)).astype(o_ref.dtype)


def _sphere_proj_split_kernel(x_ref, o_ref, ss_ref, *, d_total, block_d):
    """Two-pass solve for rows too wide to fit VMEM as a single block.

    Grid = (batch blocks, phase, D blocks).  Phase 0 streams D and carries the
    per-row sum of squares in VMEM scratch (finalizing with rsqrt on the last
    D block); phase 1 re-streams D and writes the normalized output.  The
    output index map pins phase 0 to D-block 0, so every output block is still
    DMA'd to HBM exactly once (x is read twice, out written once).
    """
    p = pl.program_id(1)
    j = pl.program_id(2)
    nd = pl.num_programs(2)

    x = x_ref[...]
    xf = x.astype(jnp.float32)

    @pl.when(jnp.logical_and(p == 0, j == 0))
    def _():
        ss_ref[...] = jnp.zeros_like(ss_ref)

    @pl.when(p == 0)
    def _():
        # Mask columns past D: the partial last D block reads undefined data.
        col = jax.lax.broadcasted_iota(jnp.int32, xf.shape, dimension=xf.ndim - 1)
        col = col + j * block_d
        xm = jnp.where(col < d_total, xf, 0.0)
        ss_ref[...] += jnp.sum(xm * xm, axis=-1, keepdims=True)

    @pl.when(jnp.logical_and(p == 0, j == nd - 1))
    def _():
        ss_ref[...] = jax.lax.rsqrt(jnp.maximum(ss_ref[...], 1e-12))

    @pl.when(p == 1)
    def _():
        o_ref[...] = (x * ss_ref[...].astype(x.dtype)).astype(o_ref.dtype)


def declarative_solve(x, *, vmem_block_budget_bytes=3 * 1024 * 1024):
    """problem.solve(x): batched unit-sphere projection y = x / ||x|| via Pallas.

    x: (B, D).  No host-side padding: ragged B / D are handled by partial
    blocks (full-D block shapes are legal even when D % 128 != 0; out-of-range
    rows of a partial batch block are never written back).
    """
    B, D = x.shape
    itemsize = jnp.dtype(x.dtype).itemsize
    sublane = max(8, 32 // itemsize)            # 8 f32 / 16 bf16 / 32 int8

    bytes_per_row = D * itemsize

    if sublane * bytes_per_row <= vmem_block_budget_bytes:
        # ---------------- single-pass path: block holds full rows ----------
        rows_budget = (vmem_block_budget_bytes // bytes_per_row) // sublane * sublane
        rows_budget = max(sublane, rows_budget)
        # v7x: target >= 8 grid steps (>= 4 per TensorCore); per-step overhead
        # (~0.35 us) is negligible at >= 1 MiB blocks.
        rows_target = _round_up(-(-B // 8), sublane)
        block_b = max(sublane, min(rows_budget, rows_target))
        if block_b >= B:
            block_b = B                          # full-dim block: always legal
            steps = 1
        else:
            steps = -(-B // block_b)
            if steps > 1 and steps % 2 == 1:     # v7x: prefer an even step count
                nb = _round_up(-(-B // (steps + 1)), sublane)
                if sublane <= nb < B:
                    block_b = nb
                    steps = -(-B // block_b)

        return pl.pallas_call(
            _sphere_proj_kernel,
            out_shape=jax.ShapeDtypeStruct((B, D), x.dtype),
            grid_spec=pltpu.PrefetchScalarGridSpec(
                num_scalar_prefetch=0,
                grid=(steps,),
                in_specs=[pl.BlockSpec((block_b, D), lambda i: (i, 0))],
                out_specs=pl.BlockSpec((block_b, D), lambda i: (i, 0)),
            ),
            compiler_params=pltpu.CompilerParams(
                # TODO(synk): on v7x verify "parallel" actually shards the batch
                # axis across both TensorCores; if not, switch this axis to
                # pltpu.CORE_PARALLEL (no-op on single-TC v5e/v6e).
                dimension_semantics=("parallel",),
            ),
            cost_estimate=pl.CostEstimate(
                flops=3 * B * D,
                transcendentals=B,
                bytes_accessed=2 * B * D * itemsize,
            ),
        )(x)

    # ---------------- split path: stream D, carry the partial norm ---------
    block_b = sublane
    block_d = (vmem_block_budget_bytes // (block_b * itemsize)) // 128 * 128
    block_d = max(128, min(block_d, _round_up(D, 128)))
    if block_d >= D:
        block_d = D
    nb = -(-B // block_b)
    nd = -(-D // block_d)

    kernel = functools.partial(_sphere_proj_split_kernel, d_total=D, block_d=block_d)
    return pl.pallas_call(
        kernel,
        out_shape=jax.ShapeDtypeStruct((B, D), x.dtype),
        grid_spec=pltpu.PrefetchScalarGridSpec(
            num_scalar_prefetch=0,
            grid=(nb, 2, nd),
            in_specs=[pl.BlockSpec((block_b, block_d), lambda i, p, j: (i, j))],
            # Phase 0 pins the output index to (i, 0) so nothing is flushed to
            # HBM until phase 1 has written real data; each output block is
            # written back exactly once.
            out_specs=pl.BlockSpec((block_b, block_d), lambda i, p, j: (i, j * p)),
            scratch_shapes=[pltpu.VMEM((block_b, 1), jnp.float32)],
        ),
        compiler_params=pltpu.CompilerParams(
            dimension_semantics=("parallel", "arbitrary", "arbitrary"),
        ),
        cost_estimate=pl.CostEstimate(
            flops=3 * B * D,
            transcendentals=B,
            bytes_accessed=3 * B * D * itemsize,   # x read twice + out once
        ),
    )(x)


class DeclarativeLayerJAX:
    """JAX analogue of ddn.DeclarativeLayer: forward == problem.solve(*inputs)."""

    def __init__(self, solve_fn):
        self._solve = solve_fn

    def __call__(self, *inputs):
        # forward: output, _ctx = problem.solve(*inputs); return output.clone()
        return self._solve(*inputs)
    # TODO(synk): backward (implicit-function-theorem gradient) is autograd-only
    # machinery in the reference and is not part of the forward kernel.


if __name__ == "__main__":
    layer = DeclarativeLayerJAX(declarative_solve)

    def ref_norm(x):
        xf = x.astype(jnp.float32)
        return xf / jnp.linalg.norm(xf, axis=-1, keepdims=True)

    # 1) Small, aligned case.
    x = jax.random.normal(jax.random.PRNGKey(0), (8, 256), dtype=jnp.float32)
    y = jax.block_until_ready(layer(x))
    assert y.shape == x.shape and y.dtype == x.dtype
    assert jnp.max(jnp.abs(y - ref_norm(x))) < 1e-5

    # 2) Ragged case (B not sublane-aligned, D not a multiple of 128):
    #    exercises the no-pad partial-block path.
    x2 = jax.random.normal(jax.random.PRNGKey(1), (10, 200), dtype=jnp.float32)
    y2 = jax.block_until_ready(layer(x2))
    assert y2.shape == x2.shape and y2.dtype == x2.dtype
    assert jnp.max(jnp.abs(y2 - ref_norm(x2))) < 1e-5

    # 3) bf16 case: f32 reduction, bf16 elementwise normalize.
    x3 = jax.random.normal(jax.random.PRNGKey(2), (16, 384), dtype=jnp.bfloat16)
    y3 = jax.block_until_ready(layer(x3))
    assert y3.shape == x3.shape and y3.dtype == x3.dtype
    assert jnp.max(jnp.abs(y3.astype(jnp.float32) - ref_norm(x3))) < 2e-2

    # 4) Force the wide-row D-split path (tiny budget) incl. a partial D block.
    x4 = jax.random.normal(jax.random.PRNGKey(3), (12, 520), dtype=jnp.float32)
    y4 = jax.block_until_ready(declarative_solve(x4, vmem_block_budget_bytes=4096))
    assert y4.shape == x4.shape and y4.dtype == x4.dtype
    assert jnp.max(jnp.abs(y4 - ref_norm(x4))) < 1e-5

    print("KERNEL_OK")
</pallas_src>

<mosaic_0001>
module attributes {stable_mosaic.version = 11 : i64} {
  func.func @_sphere_proj_kernel(%arg0: i32, %arg1: memref<8x256xf32, #tpu.memory_space<vmem>>, %arg2: memref<8x256xf32, #tpu.memory_space<vmem>>) attributes {dimension_semantics = [#tpu.dimension_semantics<parallel>], iteration_bounds = array<i64: 1>, scalar_prefetch = 0 : i64, scratch_operands = 0 : i64, tpu.core_type = #tpu.core_type<tc>, window_params = [{transform_indices = @transform_0, window_bounds = array<i64: 8, 256>}, {transform_indices = @transform_1, window_bounds = array<i64: 8, 256>}]} {
    %c0 = arith.constant 0 : index
    %c0_0 = arith.constant 0 : index
    %0 = vector.load %arg1[%c0, %c0_0] : memref<8x256xf32, #tpu.memory_space<vmem>>, vector<8x256xf32>
    %1 = arith.mulf %0, %0 : vector<8x256xf32>
    %cst = arith.constant dense<0.000000e+00> : vector<8xf32>
    %2 = vector.multi_reduction <add>, %1, %cst [1] : vector<8x256xf32> to vector<8xf32>
    %3 = vector.shape_cast %2 : vector<8xf32> to vector<8x1xf32>
    %cst_1 = arith.constant 9.99999996E-13 : f32
    %4 = vector.broadcast %cst_1 : f32 to vector<8x1xf32>
    %5 = arith.maximumf %3, %4 : vector<8x1xf32>
    %6 = math.rsqrt %5 : vector<8x1xf32>
    %7 = vector.broadcast %6 : vector<8x1xf32> to vector<8x256xf32>
    %8 = arith.mulf %0, %7 : vector<8x256xf32>
    %c0_2 = arith.constant 0 : index
    %c0_3 = arith.constant 0 : index
    %9 = vector.load %arg2[%c0_2, %c0_3] : memref<8x256xf32, #tpu.memory_space<vmem>>, vector<8x256xf32>
    tpu.vector_store %arg2[%c0_2, %c0_3], %8 {strides = array<i32>} : memref<8x256xf32, #tpu.memory_space<vmem>>, vector<8x256xf32>,
    return
  }
  func.func @transform_0(%arg0: i32) -> (i32, i32) {
    %c0_i32 = arith.constant 0 : i32
    %c0_i32_0 = arith.constant 0 : i32
    return %arg0, %c0_i32 : i32, i32
  }
  func.func @transform_1(%arg0: i32) -> (i32, i32) {
    %c0_i32 = arith.constant 0 : i32
    %c0_i32_0 = arith.constant 0 : i32
    return %arg0, %c0_i32 : i32, i32
  }
}

</mosaic_0001>

<llo_original>
// kernel: tpu_custom_call.1
$region0: #{tpu_custom_call.1}
  #allocation0 [shape = 'u32[]', space=smem, size = 0x4, offset = 0x4, fixed_abs, tag = 'smem constant byte address 0x4 - core index']
  #allocation1 [shape = 'u32[144,128]{1,0:T(1,128)}', space=vmem, size = 0x12000, scoped, tag = 'internal scratch']
  %s0 = inlined_call_operand.hbm [shape: f32[8,256], index: 0, kind: input, shape index: {}]
  %s1 = inlined_call_operand.hbm [shape: f32[8,256], index: 1, kind: output, shape index: {}]
  %s2 = sld [smem:[#allocation0]]
  $region18: #{tpu_custom_call.1} parent=0
    _
  %s4 = ssub.s32 1, %s2
  %s5 = scalar_select 0, %s4, %s2
  $region1: #{tpu_custom_call.1} parent=0
    #allocation2 [shape = 'u8[8192]{0}', space=vmem, size = 0x2000, scoped, tag = 'input window, operand 0, single buffered']
    #allocation3 [shape = 's32[1]{0}', space=sflag, size = 0x4, scoped, tag = 'scoped memory for tpu_custom_call.1']
    #allocation4 [shape = 's32[1]{0}', space=sflag, size = 0x4, scoped, tag = 'scoped memory for tpu_custom_call.1']
    #allocation5 [shape = 'u8[8192]{0}', space=vmem, size = 0x2000, scoped, tag = 'output window, operand 0, single buffered']
    %6 = vsyncpa [#allocation3], 0
    %7 = vsyncpa [#allocation4], 0
    // Predicated region
    $region2: #{tpu_custom_call.1} parent=1 // pred_check
      _
    $region3: #{tpu_custom_call.1} parent=1 // pred_check_branch
      %9 = sbr.rel (0) target = $region5
    $region4: #{tpu_custom_call.1} parent=1 // pred_region
      %s11 = ssub.s32 256, 256
      %12 = vsyncadd [#allocation3], %s11
      %s14 = sshll.u32 [#allocation2], 4
      %s15 = int_to_ptr.vmem [resolvable:$true] %s14
      %17 = dma.hbm_to_vmem [thread:$0]  %s0, 256, %s15, [#allocation3]
    $region5: #{tpu_custom_call.1} parent=1 // pred_fallthru
      _
    // Predicated region
    $region6: #{tpu_custom_call.1} parent=1 // pred_check
      _
    $region7: #{tpu_custom_call.1} parent=1 // pred_check_branch
      %19 = sbr.rel (0) target = $region9
    $region8: #{tpu_custom_call.1} parent=1 // pred_region
      %20 = dma.done [#allocation3], 256
    $region9: #{tpu_custom_call.1} parent=1 // pred_fallthru
      _
    %v21 = vld [vmem:[#allocation2] sm:$0xff]
    %v22 = vld [vmem:[#allocation2 + $0x8] sm:$0xff]
    %v23 = vmul.f32 %v21, %v21
    %v24 = vmul.f32 %v22, %v22
    %v25 = vadd.f32 %v23, %v24
    %26 = vadd.xlane.f32.xlu0 %v25
    %v27 = vpop.xlane.xlu0 %26
    %v28 = vmax.f32 %v27, 1e-12
    %v29 = vrsqrt.pop %v28
    %v30 = vmul.f32 %v21, %v29
    %v31 = vmul.f32 %v22, %v29
    %32 = vst [vmem:[#allocation5] sm:$0xff] %v30
    %33 = vst [vmem:[#allocation5 + $0x8] sm:$0xff] %v31
    // Predicated region
    $region10: #{tpu_custom_call.1} parent=1 // pred_check
      _
    $region11: #{tpu_custom_call.1} parent=1 // pred_check_branch
      %35 = sbr.rel (0) target = $region13
    $region12: #{tpu_custom_call.1} parent=1 // pred_region
      %s37 = ssub.s32 256, 256
      %38 = vsyncadd [#allocation4], %s37
      %s40 = sshll.u32 [#allocation5], 4
      %s41 = int_to_ptr.vmem [resolvable:$true] %s40
      %43 = dma.vmem_to_hbm [thread:$0]  %s41, 256, %s1, [#allocation4]
    $region13: #{tpu_custom_call.1} parent=1 // pred_fallthru
      _
    // Predicated region
    $region14: #{tpu_custom_call.1} parent=1 // pred_check
      _
    $region15: #{tpu_custom_call.1} parent=1 // pred_check_branch
      %45 = sbr.rel (0) target = $region17
    $region16: #{tpu_custom_call.1} parent=1 // pred_region
      %46 = dma.done [#allocation4], 256
    $region17: #{tpu_custom_call.1} parent=1 // pred_fallthru
      _
    %47 = vsyncpa [#allocation3], 1
    %48 = vsyncpa [#allocation4], 1

</llo_original>
